<compile_context>
chip_gen: v7x
topology: tpu7x:2x2x1
jax: 0.10.0
libtpu: 0.0.40
codegen_flags: <defaults>
</compile_context>

<pallas_src>
import jax
import jax.numpy as jnp
from jax.experimental import pallas as pl
from jax.experimental.pallas import tpu as pltpu


def _round_up(x, m):
    return ((x + m - 1) // m) * m


# ----------------------------------------------------------------------------
# Pallas kernel: pure MXU accumulation
#   y[n, d_tile] += x[n, k_tile] @ W[k_tile, d_tile]
# grid = (D tiles [parallel], K tiles [arbitrary reduction, last])
# ----------------------------------------------------------------------------
def _st_matmul_kernel(x_ref, w_ref, o_ref):
    @pl.when(pl.program_id(1) == 0)
    def _():
        o_ref[...] = jnp.zeros_like(o_ref)

    o_ref[...] += jnp.dot(x_ref[...], w_ref[...],
                          preferred_element_type=jnp.float32)


def st_pooled_matmul(x_all, w_all, *, tk, td):
    n_rows, k_pad = x_all.shape
    _, d_pad = w_all.shape
    assert k_pad % tk == 0 and d_pad % td == 0
    k_tiles = k_pad // tk
    d_tiles = d_pad // td

    return pl.pallas_call(
        _st_matmul_kernel,
        out_shape=jax.ShapeDtypeStruct((n_rows, d_pad), jnp.float32),
        grid_spec=pltpu.PrefetchScalarGridSpec(
            num_scalar_prefetch=0,
            grid=(d_tiles, k_tiles),
            in_specs=[
                pl.BlockSpec((n_rows, tk), lambda j, k: (0, k)),
                pl.BlockSpec((tk, td), lambda j, k: (k, j)),
            ],
            out_specs=pl.BlockSpec((n_rows, td), lambda j, k: (0, j)),
        ),
        compiler_params=pltpu.CompilerParams(
            dimension_semantics=("parallel", "arbitrary")),
    )(x_all, w_all)


# ----------------------------------------------------------------------------
# JAX glue: avg-pooling pyramid, bilinear sampling matrix, feature fusion.
# ----------------------------------------------------------------------------
def avg_pool_nchw(x, k):
    # nn.AvgPool2d((k, k), stride=k, padding=0): VALID window sum / k^2.
    s = jax.lax.reduce_window(x, 0.0, jax.lax.add,
                              (1, 1, k, k), (1, 1, k, k), 'VALID')
    return s / float(k * k)


def unnormalize(coord, size):
    # align_corners=False: pixel = ((coord + 1) * size - 1) / 2
    return ((coord + 1.0) * size - 1.0) * 0.5


def build_sampling_matrix(gx, gy, h, w):
    """S[s, d]: bilinear weight (zeros padding) of flat pixel s for output d."""
    ix = unnormalize(gx, w)
    iy = unnormalize(gy, h)
    x0 = jnp.floor(ix)
    y0 = jnp.floor(iy)
    wx1 = ix - x0
    wx0 = 1.0 - wx1
    wy1 = iy - y0
    wy0 = 1.0 - wy1

    d = gx.shape[0]
    cols = jnp.arange(d)
    s_mat = jnp.zeros((h * w, d), jnp.float32)
    for yy, wy in ((y0, wy0), (y0 + 1.0, wy1)):
        for xx, wx in ((x0, wx0), (x0 + 1.0, wx1)):
            valid = ((xx >= 0) & (xx < w) & (yy >= 0) & (yy < h))
            flat = (jnp.clip(yy, 0, h - 1) * w +
                    jnp.clip(xx, 0, w - 1)).astype(jnp.int32)
            weight = wy * wx * valid.astype(jnp.float32)
            s_mat = s_mat.at[flat, cols].add(weight)
    return s_mat  # (H*W, D)


def spatial_transformer_pooled_2d(x, grid_param, features, bias,
                                  pool_steps=1, pool_kern=2,
                                  compute_dtype=jnp.bfloat16,
                                  tk=512, td=128):
    """Forward pass of SpatialTransformerPooled2d (shift=None, positive=False)."""
    n, c, h, w = x.shape
    outdims = grid_param.shape[1]
    m = pool_steps + 1

    grid_clamped = jnp.clip(grid_param, -1.0, 1.0)
    gx = grid_clamped[0, :, 0, 0]            # x coord -> width axis (dim 3)
    gy = grid_clamped[0, :, 0, 1]            # y coord -> height axis (dim 2)

    feat = features.reshape(m, c, outdims).astype(jnp.float32)   # (m, C, D)

    # Build the packed activation (N, K) and fused weight (K, D); K is the
    # concatenation over levels of C*H_l*W_l (no zero padding per level).
    x_chunks, w_chunks = [], []
    xl = x.astype(jnp.float32)
    for p in range(m):
        if p > 0:
            xl = avg_pool_nchw(xl, pool_kern)
        hl, wl = xl.shape[2], xl.shape[3]
        x_chunks.append(xl.reshape(n, c * hl * wl))
        s_mat = build_sampling_matrix(gx, gy, hl, wl)             # (WH_l, D)
        # fused weight: W[(c, s), d] = S[s, d] * feat[p, c, d]
        w_fused = feat[p][:, None, :] * s_mat[None, :, :]         # (C, WH_l, D)
        w_chunks.append(w_fused.reshape(c * hl * wl, outdims))

    x_all = jnp.concatenate(x_chunks, axis=1)                     # (N, K)
    w_all = jnp.concatenate(w_chunks, axis=0)                     # (K, D)
    k_dim = x_all.shape[1]

    # Tile sizes: K chunks (<= tk, multiple of 128), D padded to 128 lanes.
    tk = min(tk, _round_up(k_dim, 128))
    k_pad = _round_up(k_dim, tk)
    d_pad = _round_up(outdims, td)

    x_all = jnp.pad(x_all, ((0, 0), (0, k_pad - k_dim))).astype(compute_dtype)
    w_all = jnp.pad(w_all, ((0, k_pad - k_dim),
                            (0, d_pad - outdims))).astype(compute_dtype)

    y = st_pooled_matmul(x_all, w_all, tk=tk, td=td)
    return y[:, :outdims] + bias[None, :].astype(jnp.float32)


# ----------------------------------------------------------------------------
# Independent pure-JAX reference (gather-based grid_sample) for validation.
# ----------------------------------------------------------------------------
def grid_sample_ref(x, gx, gy):
    n, c, h, w = x.shape
    ix = unnormalize(gx, w)
    iy = unnormalize(gy, h)
    x0 = jnp.floor(ix)
    y0 = jnp.floor(iy)
    wx1 = ix - x0
    wx0 = 1.0 - wx1
    wy1 = iy - y0
    wy0 = 1.0 - wy1

    def pix(yy, xx):
        valid = ((xx >= 0) & (xx < w) & (yy >= 0) & (yy < h)).astype(x.dtype)
        xc = jnp.clip(xx, 0, w - 1).astype(jnp.int32)
        yc = jnp.clip(yy, 0, h - 1).astype(jnp.int32)
        return x[:, :, yc, xc] * valid  # (N, C, D)

    return (pix(y0, x0) * (wy0 * wx0) + pix(y0, x0 + 1.0) * (wy0 * wx1) +
            pix(y0 + 1.0, x0) * (wy1 * wx0) +
            pix(y0 + 1.0, x0 + 1.0) * (wy1 * wx1))


def reference_forward(x, grid_param, features, bias, pool_steps, pool_kern):
    n, c, _, _ = x.shape
    outdims = grid_param.shape[1]
    m = pool_steps + 1
    grid_clamped = jnp.clip(grid_param, -1.0, 1.0)
    gx = grid_clamped[0, :, 0, 0]
    gy = grid_clamped[0, :, 0, 1]
    feat = features.reshape(m, c, outdims)
    y = jnp.zeros((n, outdims), jnp.float32)
    xl = x
    for p in range(m):
        if p > 0:
            xl = avg_pool_nchw(xl, pool_kern)
        sampled = grid_sample_ref(xl, gx, gy)          # (N, C, D)
        y = y + jnp.sum(sampled * feat[p][None], axis=1)
    return y + bias[None, :]


if __name__ == "__main__":
    # Module config: in_shape=(C, H, W)=(4, 16, 16), outdims=16,
    # pool_steps=1, bias=True, pool_kern=2, init_range=0.1
    N, C, H, W = 2, 4, 16, 16
    OUTDIMS = 16
    POOL_STEPS = 1
    POOL_KERN = 2
    INIT_RANGE = 0.1
    M = POOL_STEPS + 1

    key = jax.random.PRNGKey(0)
    kx, kg = jax.random.split(key)

    x = jax.random.normal(kx, (N, C, H, W), dtype=jnp.float32)

    # Parameters, initialized per the module's initialize():
    grid_param = jax.random.uniform(kg, (1, OUTDIMS, 1, 2), dtype=jnp.float32,
                                    minval=-INIT_RANGE, maxval=INIT_RANGE)
    features = jnp.full((1, C * M, 1, OUTDIMS), 1.0 / C, dtype=jnp.float32)
    bias = jnp.zeros((OUTDIMS,), dtype=jnp.float32)

    y = spatial_transformer_pooled_2d(x, grid_param, features, bias,
                                      pool_steps=POOL_STEPS,
                                      pool_kern=POOL_KERN)
    y = jax.block_until_ready(y)

    y_ref = reference_forward(x, grid_param, features, bias,
                              POOL_STEPS, POOL_KERN)
    y_ref = jax.block_until_ready(y_ref)

    assert y.shape == (N, OUTDIMS)
    # bf16 matmul inputs with f32 accumulation: loosen tolerance accordingly.
    assert jnp.allclose(y, y_ref, atol=2e-2, rtol=2e-2), (
        f"mismatch: max abs err {jnp.max(jnp.abs(y - y_ref))}")
    print("KERNEL_OK")
</pallas_src>

<mosaic_0001>
module attributes {stable_mosaic.version = 11 : i64} {
  func.func @_st_matmul_kernel(%arg0: i32, %arg1: i32, %arg2: memref<2x512xbf16, #tpu.memory_space<vmem>>, %arg3: memref<512x128xbf16, #tpu.memory_space<vmem>>, %arg4: memref<2x128xf32, #tpu.memory_space<vmem>>) attributes {dimension_semantics = [#tpu.dimension_semantics<parallel>, #tpu.dimension_semantics<arbitrary>], iteration_bounds = array<i64: 1, 3>, scalar_prefetch = 0 : i64, scratch_operands = 0 : i64, tpu.core_type = #tpu.core_type<tc>, window_params = [{transform_indices = @transform_0, window_bounds = array<i64: 2, 512>}, {transform_indices = @transform_1, window_bounds = array<i64: 512, 128>}, {transform_indices = @transform_2, window_bounds = array<i64: 2, 128>}]} {
    %c0_i32 = arith.constant 0 : i32
    %0 = arith.cmpi eq, %arg1, %c0_i32 : i32
    %1 = arith.extui %0 : i1 to i32
    %c0_i32_0 = arith.constant 0 : i32
    %2 = arith.cmpi ne, %1, %c0_i32_0 : i32
    scf.if %2 {
      %cst_8 = arith.constant 0.000000e+00 : f32
      %9 = vector.broadcast %cst_8 : f32 to vector<2x128xf32>
      %c0_9 = arith.constant 0 : index
      %c0_10 = arith.constant 0 : index
      %10 = vector.load %arg4[%c0_9, %c0_10] : memref<2x128xf32, #tpu.memory_space<vmem>>, vector<2x128xf32>
      tpu.vector_store %arg4[%c0_9, %c0_10], %9 {strides = array<i32>} : memref<2x128xf32, #tpu.memory_space<vmem>>, vector<2x128xf32>,
    } else {
    }
    %c0 = arith.constant 0 : index
    %c0_1 = arith.constant 0 : index
    %3 = vector.load %arg4[%c0, %c0_1] : memref<2x128xf32, #tpu.memory_space<vmem>>, vector<2x128xf32>
    %c0_2 = arith.constant 0 : index
    %c0_3 = arith.constant 0 : index
    %4 = vector.load %arg2[%c0_2, %c0_3] : memref<2x512xbf16, #tpu.memory_space<vmem>>, vector<2x512xbf16>
    %c0_4 = arith.constant 0 : index
    %c0_5 = arith.constant 0 : index
    %5 = vector.load %arg3[%c0_4, %c0_5] : memref<512x128xbf16, #tpu.memory_space<vmem>>, vector<512x128xbf16>
    %cst = arith.constant dense<0.000000e+00> : vector<2x128xf32>
    %6 = tpu.matmul %4, %5, %cst {dimension_numbers = #tpu.dot_dimension_numbers<[1], [0], [0], [1], [0, 0, 1, 1], [], []>} : vector<2x512xbf16>, vector<512x128xbf16>, vector<2x128xf32> -> vector<2x128xf32>
    %7 = arith.addf %3, %6 : vector<2x128xf32>
    %c0_6 = arith.constant 0 : index
    %c0_7 = arith.constant 0 : index
    %8 = vector.load %arg4[%c0_6, %c0_7] : memref<2x128xf32, #tpu.memory_space<vmem>>, vector<2x128xf32>
    tpu.vector_store %arg4[%c0_6, %c0_7], %7 {strides = array<i32>} : memref<2x128xf32, #tpu.memory_space<vmem>>, vector<2x128xf32>,
    return
  }
  func.func @transform_0(%arg0: i32, %arg1: i32) -> (i32, i32) {
    %c0_i32 = arith.constant 0 : i32
    %c0_i32_0 = arith.constant 0 : i32
    return %c0_i32, %arg1 : i32, i32
  }
  func.func @transform_1(%arg0: i32, %arg1: i32) -> (i32, i32) {
    %c0_i32 = arith.constant 0 : i32
    return %arg1, %arg0 : i32, i32
  }
  func.func @transform_2(%arg0: i32, %arg1: i32) -> (i32, i32) {
    %c0_i32 = arith.constant 0 : i32
    %c0_i32_0 = arith.constant 0 : i32
    return %c0_i32, %arg0 : i32, i32
  }
}

</mosaic_0001>

<llo_original>
// kernel: tpu_custom_call.1
$region0: #{tpu_custom_call.1}
  #allocation0 [shape = 'u32[]', space=smem, size = 0x4, offset = 0x4, fixed_abs, tag = 'smem constant byte address 0x4 - core index']
  #allocation1 [shape = 'u32[144,128]{1,0:T(1,128)}', space=vmem, size = 0x12000, scoped, tag = 'internal scratch']
  %s0 = inlined_call_operand.hbm [shape: bf16[2,1536], index: 0, kind: input, shape index: {}]
  %s1 = inlined_call_operand.hbm [shape: bf16[1536,128], index: 1, kind: input, shape index: {}]
  %s2 = inlined_call_operand.hbm [shape: f32[2,128], index: 2, kind: output, shape index: {}]
  %s3 = sld [smem:[#allocation0]]
  $region53: #{tpu_custom_call.1} parent=0
    _
  %s5 = ssub.s32 1, %s3
  %s6 = scalar_select 0, %s5, %s3
  $region1: #{tpu_custom_call.1} parent=0
    #allocation2 [shape = 'u8[4096]{0}', space=vmem, size = 0x1000, scoped, tag = 'input window, operand 0']
    #allocation3 [shape = 's32[2]{0}', space=sflag, size = 0x8, scoped, tag = 'scoped memory for tpu_custom_call.1']
    #allocation4 [shape = 's32[2]{0}', space=sflag, size = 0x8, scoped, tag = 'scoped memory for tpu_custom_call.1']
    #allocation5 [shape = 'u8[262144]{0}', space=vmem, size = 0x40000, scoped, tag = 'input window, operand 1']
    #allocation6 [shape = 's32[2]{0}', space=sflag, size = 0x8, scoped, tag = 'scoped memory for tpu_custom_call.1']
    #allocation7 [shape = 'u8[1024]{0}', space=vmem, size = 0x400, scoped, tag = 'output window, operand 0, single buffered']
    %7 = vsyncpa [#allocation3], 0
    %s8 = scalar_lea.sflag [#allocation3], 1
    %9 = vsyncpa %s8, 0
    %10 = vsyncpa [#allocation6], 0
    %s11 = scalar_lea.sflag [#allocation6], 1
    %12 = vsyncpa %s11, 0
    %13 = vsyncpa [#allocation4], 0
    loop: start=0, step=1, limit=5
    $region2: #{tpu_custom_call.1} parent=1 // loop_pre_header
      _
    $region3: #{tpu_custom_call.1} parent=1 // loop_header
      %s15 = sphi 0, %s19
      %p16 = scmp.ge.s32.totalorder %s15, 5
      %s22 = sphi 0, %s34
      %s23 = sphi 0, %s30
      %s24 = sphi 0, %s22
      %s25 = sphi 0, %s23
      %s26 = sphi 0, %s24
      %s27 = sphi 0, %s25
      %s37 = sphi 0, %s39
      %s40 = sphi 0, %s37
      %s41 = sphi 0, %s40
      %s57 = sphi 0, %s41
      %s65 = sphi 0, %s67
      %s68 = sphi 0, %s65
      %s69 = sphi 0, %s68
      %s85 = sphi 0, %s69
      %s91 = sphi 0, %s93
      %s94 = sphi 0, %s91
      %s95 = sphi 0, %s94
      %s111 = sphi 0, %s95
    $region4: #{tpu_custom_call.1} parent=1 // loop_header_branch
      %18 = sbr.rel (%p16) target = $region8
    $region5: #{tpu_custom_call.1} parent=1 // loop_body
      %s20 = ssub.s32 %s15, 1
      %s21 = ssub.s32 %s15, 2
      %s28 = sadd.s32 1, %s23
      %p29 = scmp.ge.s32.totalorder %s28, 3
      %s30 = scalar_select %p29, 0, %s28
      %s31 = sadd.s32 1, %s22
      %s32 = scalar_select %p29, %s31, %s22
      %p33 = scmp.ge.s32.totalorder %s32, 1
      %s34 = scalar_select %p33, 0, %s32
      %s35 = ssub.s32 %s23, %s30
      %p36 = scmp.eq.s32.totalorder %s35, 0
      %s38 = sadd.s32 %s37, 1
      %s39 = scalar_select %p36, %s37, %s38
      %p42 = pneg %p36
      %p43 = scmp.eq.s32.totalorder %s15, 2
      %p44 = por %p42, %p43
      %p45 = scmp.ne.s32.totalorder %s37, %s40
      %p46 = scmp.eq.s32.totalorder %s15, 0
      %p47 = por %p45, %p46
      %p48 = scmp.ne.s32.totalorder %s37, %s40
      %p49 = scmp.eq.s32.totalorder %s20, 2
      %p50 = por %p48, %p49
      %p51 = scmp.ne.s32.totalorder %s40, %s41
      %p52 = scmp.eq.s32.totalorder %s20, 0
      %p53 = por %p51, %p52
      %p54 = scmp.ne.s32.totalorder %s40, %s41
      %p55 = scmp.eq.s32.totalorder %s21, 2
      %p56 = por %p54, %p55
      %p58 = scmp.ne.s32.totalorder %s41, %s57
      %p59 = scmp.eq.s32.totalorder %s21, 0
      %p60 = por %p58, %p59
      %s61 = ssub.s32 %s23, %s30
      %s62 = ssub.s32 %s22, %s34
      %s63 = sor.u32 %s61, %s62
      %p64 = scmp.eq.s32.totalorder %s63, 0
      %s66 = sadd.s32 %s65, 1
      %s67 = scalar_select %p64, %s65, %s66
      %p70 = pneg %p64
      %p71 = scmp.eq.s32.totalorder %s15, 2
      %p72 = por %p70, %p71
      %p73 = scmp.ne.s32.totalorder %s65, %s68
      %p74 = scmp.eq.s32.totalorder %s15, 0
      %p75 = por %p73, %p74
      %p76 = scmp.ne.s32.totalorder %s65, %s68
      %p77 = scmp.eq.s32.totalorder %s20, 2
      %p78 = por %p76, %p77
      %p79 = scmp.ne.s32.totalorder %s68, %s69
      %p80 = scmp.eq.s32.totalorder %s20, 0
      %p81 = por %p79, %p80
      %p82 = scmp.ne.s32.totalorder %s68, %s69
      %p83 = scmp.eq.s32.totalorder %s21, 2
      %p84 = por %p82, %p83
      %p86 = scmp.ne.s32.totalorder %s69, %s85
      %p87 = scmp.eq.s32.totalorder %s21, 0
      %p88 = por %p86, %p87
      %s89 = ssub.s32 %s22, %s34
      %p90 = scmp.eq.s32.totalorder %s89, 0
      %s92 = sadd.s32 %s91, 1
      %s93 = scalar_select %p90, %s91, %s92
      %p96 = pneg %p90
      %p97 = scmp.eq.s32.totalorder %s15, 2
      %p98 = por %p96, %p97
      %p99 = scmp.ne.s32.totalorder %s91, %s94
      %p100 = scmp.eq.s32.totalorder %s15, 0
      %p101 = por %p99, %p100
      %p102 = scmp.ne.s32.totalorder %s91, %s94
      %p103 = scmp.eq.s32.totalorder %s20, 2
      %p104 = por %p102, %p103
      %p105 = scmp.ne.s32.totalorder %s94, %s95
      %p106 = scmp.eq.s32.totalorder %s20, 0
      %p107 = por %p105, %p106
      %p108 = scmp.ne.s32.totalorder %s94, %s95
      %p109 = scmp.eq.s32.totalorder %s21, 2
      %p110 = por %p108, %p109
      %p112 = scmp.ne.s32.totalorder %s95, %s111
      %p113 = scmp.eq.s32.totalorder %s21, 0
      %p114 = por %p112, %p113
      %p115 = scmp.le.s32.totalorder 1, %s15
      %p116 = scmp.lt.s32.totalorder %s15, 4
      %p117 = pnand %p115, %p116
      %p118 = pneg %p117
      // Predicated region
      $region9: #{tpu_custom_call.1} parent=5 // pred_check
        _
      $region10: #{tpu_custom_call.1} parent=5 // pred_check_branch
        %120 = sbr.rel (%p117) target = $region12
      $region11: #{tpu_custom_call.1} parent=5 // pred_region
        %s121 = ssub.s32 %s15, 1
      $region12: #{tpu_custom_call.1} parent=5 // pred_fallthru
        _
      %p122 = scmp.lt.s32.totalorder %s15, 3
      // Predicated region
      $region13: #{tpu_custom_call.1} parent=5 // pred_check
        %p123 = pneg %p122
      $region14: #{tpu_custom_call.1} parent=5 // pred_check_branch
        %125 = sbr.rel (%p123) target = $region16
      $region15: #{tpu_custom_call.1} parent=5 // pred_region
        // Predicated region
        $region17: #{tpu_custom_call.1} parent=15 // pred_check
          %p126 = pneg %p47
        $region18: #{tpu_custom_call.1} parent=15 // pred_check_branch
          %128 = sbr.rel (%p126) target = $region20
        $region19: #{tpu_custom_call.1} parent=15 // pred_region
          %s129 = sand.u32 %s37, 1
          %s130 = scalar_lea.sflag [#allocation3], %s129
          %s131 = sand.u32 %s37, 1
          %s132 = smul.addr %s131, 4
          %s133 = scalar_lea.vmem [#allocation2], %s132
          %s134 = smul.u32 4, %s23
          %s136 = ssub.s32 64, 64
          %137 = vsyncadd %s130, %s136
          %s138 = smul.addr %s134, 16
          %s139 = scalar_lea.hbm %s0, %s138
          %s141 = sshll.u32 %s133, 4
          %s142 = int_to_ptr.vmem [resolvable:$true] %s141
          %144 = dma.hbm_to_vmem [thread:$0]  %s139, 64, %s142, %s130
        $region20: #{tpu_custom_call.1} parent=15 // pred_fallthru
          _
        // Predicated region
        $region21: #{tpu_custom_call.1} parent=15 // pred_check
          %p145 = pneg %p75
        $region22: #{tpu_custom_call.1} parent=15 // pred_check_branch
          %147 = sbr.rel (%p145) target = $region24
        $region23: #{tpu_custom_call.1} parent=15 // pred_region
          %s148 = sand.u32 %s65, 1
          %s149 = scalar_lea.sflag [#allocation6], %s148
          %s150 = sand.u32 %s65, 1
          %s151 = smul.addr %s150, 256
          %s152 = scalar_lea.vmem [#allocation5], %s151
          %s153 = smul.u32 64, %s23
          %s155 = ssub.s32 4096, 4096
          %156 = vsyncadd %s149, %s155
          %s157 = sadd.s32 %s22, %s153
          %s158 = smul.addr %s157, 64
          %s159 = scalar_lea.hbm %s1, %s158
          %s160 = sshll.u32 %s152, 4
          %s161 = int_to_ptr.vmem [resolvable:$true] %s160
          %166 = dma.hbm_to_vmem [thread:$0]  %s159, 4096, %s161, %s149, 64, 64, 4
        $region24: #{tpu_custom_call.1} parent=15 // pred_fallthru
          _
      $region16: #{tpu_custom_call.1} parent=5 // pred_fallthru
        _
      %p167 = scmp.le.s32.totalorder 1, %s15
      %p168 = scmp.lt.s32.totalorder %s15, 4
      %p169 = pnand %p167, %p168
      %p170 = pneg %p169
      // Predicated region
      $region25: #{tpu_custom_call.1} parent=5 // pred_check
        _
      $region26: #{tpu_custom_call.1} parent=5 // pred_check_branch
        %172 = sbr.rel (%p169) target = $region28
      $region27: #{tpu_custom_call.1} parent=5 // pred_region
        %s173 = ssub.s32 %s15, 1
        %s174 = sand.u32 %s40, 1
        %s175 = scalar_lea.sflag [#allocation3], %s174
        %s176 = sand.u32 %s40, 1
        %s177 = smul.addr %s176, 4
        %s178 = scalar_lea.vmem [#allocation2], %s177
        // Predicated region
        $region29: #{tpu_custom_call.1} parent=27 // pred_check
          %p179 = pneg %p53
        $region30: #{tpu_custom_call.1} parent=27 // pred_check_branch
          %181 = sbr.rel (%p179) target = $region32
        $region31: #{tpu_custom_call.1} parent=27 // pred_region
          %182 = dma.done %s175, 64
        $region32: #{tpu_custom_call.1} parent=27 // pred_fallthru
          _
        %s183 = sand.u32 %s68, 1
        %s184 = scalar_lea.sflag [#allocation6], %s183
        %s185 = sand.u32 %s68, 1
        %s186 = smul.addr %s185, 256
        %s187 = scalar_lea.vmem [#allocation5], %s186
        // Predicated region
        $region33: #{tpu_custom_call.1} parent=27 // pred_check
          %p188 = pneg %p81
        $region34: #{tpu_custom_call.1} parent=27 // pred_check_branch
          %190 = sbr.rel (%p188) target = $region36
        $region35: #{tpu_custom_call.1} parent=27 // pred_region
          %191 = dma.done %s184, 4096
        $region36: #{tpu_custom_call.1} parent=27 // pred_fallthru
          _
        %s192 = sand.u32 %s40, 1
        %s193 = scalar_lea.sflag [#allocation3], %s192
        %s194 = sand.u32 %s40, 1
        %s195 = smul.addr %s194, 4
        %s196 = scalar_lea.vmem [#allocation2], %s195
        %p197 = pneg %p53
        %p198 = pneg %p50
        %s199 = sand.u32 %s68, 1
        %s200 = scalar_lea.sflag [#allocation6], %s199
        %s201 = sand.u32 %s68, 1
        %s202 = smul.addr %s201, 256
        %s203 = scalar_lea.vmem [#allocation5], %s202
        %p204 = pneg %p81
        %p205 = pneg %p78
        %p206 = pneg %p107
        %p207 = pneg %p104
        %s208 = smul.u32 4, %s25
        %s209 = smul.u32 64, %s25
        %p211 = scmp.eq.s32.totalorder %s25, 0
        // Predicated region
        $region37: #{tpu_custom_call.1} parent=27 // pred_check
          %p212 = pneg %p211
        $region38: #{tpu_custom_call.1} parent=27 // pred_check_branch
          %214 = sbr.rel (%p212) target = $region40
        $region39: #{tpu_custom_call.1} parent=27 // pred_region
          %215 = vst [vmem:[#allocation7] sm:$0x3] 0.0
        $region40: #{tpu_custom_call.1} parent=27 // pred_fallthru
          _
        %v216 = vld [vmem:[#allocation7] sm:$0x3]
        %v217 = vld [vmem:[%s178] sm:$0xf]
        %v218 = vld [vmem:[%s187] sm:$0xf]
        %v219 = vld [vmem:[%s187 + $0x4] sm:$0xf]
        %v220 = vld [vmem:[%s187 + $0x8] sm:$0xf]
        %v221 = vld [vmem:[%s187 + $0xc] sm:$0xf]
        %v222 = vld [vmem:[%s187 + $0x10] sm:$0xf]
        %v223 = vld [vmem:[%s187 + $0x14] sm:$0xf]
        %v224 = vld [vmem:[%s187 + $0x18] sm:$0xf]
        %v225 = vld [vmem:[%s187 + $0x1c] sm:$0xf]
        %v226 = vld [vmem:[%s187 + $0x20] sm:$0xf]
        %v227 = vld [vmem:[%s187 + $0x24] sm:$0xf]
        %v228 = vld [vmem:[%s187 + $0x28] sm:$0xf]
        %v229 = vld [vmem:[%s187 + $0x2c] sm:$0xf]
        %v230 = vld [vmem:[%s187 + $0x30] sm:$0xf]
        %v231 = vld [vmem:[%s187 + $0x34] sm:$0xf]
        %v232 = vld [vmem:[%s187 + $0x38] sm:$0xf]
        %v233 = vld [vmem:[%s187 + $0x3c] sm:$0xf]
        %v234 = vld [vmem:[%s187 + $0x40] sm:$0xf]
        %v235 = vld [vmem:[%s187 + $0x44] sm:$0xf]
        %v236 = vld [vmem:[%s187 + $0x48] sm:$0xf]
        %v237 = vld [vmem:[%s187 + $0x4c] sm:$0xf]
        %v238 = vld [vmem:[%s187 + $0x50] sm:$0xf]
        %v239 = vld [vmem:[%s187 + $0x54] sm:$0xf]
        %v240 = vld [vmem:[%s187 + $0x58] sm:$0xf]
        %v241 = vld [vmem:[%s187 + $0x5c] sm:$0xf]
        %v242 = vld [vmem:[%s187 + $0x60] sm:$0xf]
        %v243 = vld [vmem:[%s187 + $0x64] sm:$0xf]
        %v244 = vld [vmem:[%s187 + $0x68] sm:$0xf]
        %v245 = vld [vmem:[%s187 + $0x6c] sm:$0xf]
        %v246 = vld [vmem:[%s187 + $0x70] sm:$0xf]
        %v247 = vld [vmem:[%s187 + $0x74] sm:$0xf]
        %v248 = vld [vmem:[%s187 + $0x78] sm:$0xf]
        %v249 = vld [vmem:[%s187 + $0x7c] sm:$0xf]
        %v250 = vld [vmem:[%s187 + $0x80] sm:$0xf]
        %v251 = vld [vmem:[%s187 + $0x84] sm:$0xf]
        %v252 = vld [vmem:[%s187 + $0x88] sm:$0xf]
        %v253 = vld [vmem:[%s187 + $0x8c] sm:$0xf]
        %v254 = vld [vmem:[%s187 + $0x90] sm:$0xf]
        %v255 = vld [vmem:[%s187 + $0x94] sm:$0xf]
        %v256 = vld [vmem:[%s187 + $0x98] sm:$0xf]
        %v257 = vld [vmem:[%s187 + $0x9c] sm:$0xf]
        %v258 = vld [vmem:[%s187 + $0xa0] sm:$0xf]
        %v259 = vld [vmem:[%s187 + $0xa4] sm:$0xf]
        %v260 = vld [vmem:[%s187 + $0xa8] sm:$0xf]
        %v261 = vld [vmem:[%s187 + $0xac] sm:$0xf]
        %v262 = vld [vmem:[%s187 + $0xb0] sm:$0xf]
        %v263 = vld [vmem:[%s187 + $0xb4] sm:$0xf]
        %v264 = vld [vmem:[%s187 + $0xb8] sm:$0xf]
        %v265 = vld [vmem:[%s187 + $0xbc] sm:$0xf]
        %v266 = vld [vmem:[%s187 + $0xc0] sm:$0xf]
        %v267 = vld [vmem:[%s187 + $0xc4] sm:$0xf]
        %v268 = vld [vmem:[%s187 + $0xc8] sm:$0xf]
        %v269 = vld [vmem:[%s187 + $0xcc] sm:$0xf]
        %v270 = vld [vmem:[%s187 + $0xd0] sm:$0xf]
        %v271 = vld [vmem:[%s187 + $0xd4] sm:$0xf]
        %v272 = vld [vmem:[%s187 + $0xd8] sm:$0xf]
        %v273 = vld [vmem:[%s187 + $0xdc] sm:$0xf]
        %v274 = vld [vmem:[%s187 + $0xe0] sm:$0xf]
        %v275 = vld [vmem:[%s187 + $0xe4] sm:$0xf]
        %v276 = vld [vmem:[%s187 + $0xe8] sm:$0xf]
        %v277 = vld [vmem:[%s187 + $0xec] sm:$0xf]
        %v278 = vld [vmem:[%s187 + $0xf0] sm:$0xf]
        %v279 = vld [vmem:[%s187 + $0xf4] sm:$0xf]
        %v280 = vld [vmem:[%s187 + $0xf8] sm:$0xf]
        %v281 = vld [vmem:[%s187 + $0xfc] sm:$0xf]
        %v284 = vunpack.c.l.s4 1966171168
        %v285 = vunpack.c.0.s8 %v284
        %v286 = vlaneseq
        %v287 = vshrl.u32 %v286, 7
        %v288 = vsub.s32 %v285, %v287
        %v289 = vrot.slane %v217, %v288
        %v290 = vcombine.high %v289, %v289
        %v292 = vunpack.c.l.s4 1966171168
        %v293 = vunpack.c.0.s8 %v292
        %v294 = vlaneseq
        %v295 = vshrl.u32 %v294, 7
        %v296 = vsub.s32 %v293, %v295
        %v297 = vrot.slane %v289, %v296
        %v299 = vunpack.c.l.s4 1966171168
        %v300 = vunpack.c.0.s8 %v299
        %v301 = vlaneseq
        %v302 = vshrl.u32 %v301, 7
        %v303 = vsub.s32 %v300, %v302
        %v304 = vrot.slane %v290, %v303
        %v305 = vcombine.high %v297, %v297
        %v306 = vcombine.high %v304, %v304
        %v375 = vunpack.c.l.b16 %v218
        %v376 = vunpack.c.l.b16 %v219
        %v377 = vunpack.c.l.b16 %v220
        %v378 = vunpack.c.l.b16 %v221
        %v379 = vunpack.c.l.b16 %v222
        %v380 = vunpack.c.l.b16 %v223
        %v381 = vunpack.c.l.b16 %v224
        %v382 = vunpack.c.l.b16 %v225
        %v383 = vunpack.c.l.b16 %v226
        %v384 = vunpack.c.l.b16 %v227
        %v385 = vunpack.c.l.b16 %v228
        %v386 = vunpack.c.l.b16 %v229
        %v387 = vunpack.c.l.b16 %v230
        %v388 = vunpack.c.l.b16 %v231
        %v389 = vunpack.c.l.b16 %v232
        %v390 = vunpack.c.l.b16 %v233
        %v391 = vunpack.c.l.b16 %v234
        %v392 = vunpack.c.l.b16 %v235
        %v393 = vunpack.c.l.b16 %v236
        %v394 = vunpack.c.l.b16 %v237
        %v395 = vunpack.c.l.b16 %v238
        %v396 = vunpack.c.l.b16 %v239
        %v397 = vunpack.c.l.b16 %v240
        %v398 = vunpack.c.l.b16 %v241
        %v399 = vunpack.c.l.b16 %v242
        %v400 = vunpack.c.l.b16 %v243
        %v401 = vunpack.c.l.b16 %v244
        %v402 = vunpack.c.l.b16 %v245
        %v403 = vunpack.c.l.b16 %v246
        %v404 = vunpack.c.l.b16 %v247
        %v405 = vunpack.c.l.b16 %v248
        %v406 = vunpack.c.l.b16 %v249
        %v407 = vunpack.c.l.b16 %v250
        %v408 = vunpack.c.l.b16 %v251
        %v409 = vunpack.c.l.b16 %v252
        %v410 = vunpack.c.l.b16 %v253
        %v411 = vunpack.c.l.b16 %v254
        %v412 = vunpack.c.l.b16 %v255
        %v413 = vunpack.c.l.b16 %v256
        %v414 = vunpack.c.l.b16 %v257
        %v415 = vunpack.c.l.b16 %v258
        %v416 = vunpack.c.l.b16 %v259
        %v417 = vunpack.c.l.b16 %v260
        %v418 = vunpack.c.l.b16 %v261
        %v419 = vunpack.c.l.b16 %v262
        %v420 = vunpack.c.l.b16 %v263
        %v421 = vunpack.c.l.b16 %v264
        %v422 = vunpack.c.l.b16 %v265
        %v423 = vunpack.c.l.b16 %v266
        %v424 = vunpack.c.l.b16 %v267
        %v425 = vunpack.c.l.b16 %v268
        %v426 = vunpack.c.l.b16 %v269
        %v427 = vunpack.c.l.b16 %v270
        %v428 = vunpack.c.l.b16 %v271
        %v429 = vunpack.c.l.b16 %v272
        %v430 = vunpack.c.l.b16 %v273
        %v431 = vunpack.c.l.b16 %v274
        %v432 = vunpack.c.l.b16 %v275
        %v433 = vunpack.c.l.b16 %v276
        %v434 = vunpack.c.l.b16 %v277
        %v435 = vunpack.c.l.b16 %v278
        %v436 = vunpack.c.l.b16 %v279
        %v437 = vunpack.c.l.b16 %v280
        %v438 = vunpack.c.l.b16 %v281
        %v439 = vpack.c.b16 %v376, %v375
        %v440 = vpack.c.b16 %v378, %v377
        %v441 = vpack.c.b16 %v380, %v379
        %v442 = vpack.c.b16 %v382, %v381
        %v443 = vpack.c.b16 %v384, %v383
        %v444 = vpack.c.b16 %v386, %v385
        %v445 = vpack.c.b16 %v388, %v387
        %v446 = vpack.c.b16 %v390, %v389
        %v447 = vpack.c.b16 %v392, %v391
        %v448 = vpack.c.b16 %v394, %v393
        %v449 = vpack.c.b16 %v396, %v395
        %v450 = vpack.c.b16 %v398, %v397
        %v451 = vpack.c.b16 %v400, %v399
        %v452 = vpack.c.b16 %v402, %v401
        %v453 = vpack.c.b16 %v404, %v403
        %v454 = vpack.c.b16 %v406, %v405
        %v455 = vpack.c.b16 %v408, %v407
        %v456 = vpack.c.b16 %v410, %v409
        %v457 = vpack.c.b16 %v412, %v411
        %v458 = vpack.c.b16 %v414, %v413
        %v459 = vpack.c.b16 %v416, %v415
        %v460 = vpack.c.b16 %v418, %v417
        %v461 = vpack.c.b16 %v420, %v419
        %v462 = vpack.c.b16 %v422, %v421
        %v463 = vpack.c.b16 %v424, %v423
        %v464 = vpack.c.b16 %v426, %v425
        %v465 = vpack.c.b16 %v428, %v427
        %v466 = vpack.c.b16 %v430, %v429
        %v467 = vpack.c.b16 %v432, %v431
        %v468 = vpack.c.b16 %v434, %v433
        %v469 = vpack.c.b16 %v436, %v435
        %v470 = vpack.c.b16 %v438, %v437
        %503 = vmatprep.subr.bf16.mxu0 0
        %504 = vmatpush1.bf16.msra.mxu0 %v439
        %505 = vmatprep.subr.bf16.mxu0 0
        %506 = vmatpush1.bf16.msra.mxu0 %v440
        %507 = vmatprep.subr.bf16.mxu0 0
        %508 = vmatpush1.bf16.msra.mxu0 %v441
        %509 = vmatprep.subr.bf16.mxu0 0
        %510 = vmatpush1.bf16.msra.mxu0 %v442
        %511 = vmatprep.subr.bf16.mxu0 0
        %512 = vmatpush1.bf16.msra.mxu0 %v443
        %513 = vmatprep.subr.bf16.mxu0 0
        %514 = vmatpush1.bf16.msra.mxu0 %v444
        %515 = vmatprep.subr.bf16.mxu0 0
        %516 = vmatpush1.bf16.msra.mxu0 %v445
        %517 = vmatprep.subr.bf16.mxu0 0
        %518 = vmatpush1.bf16.msra.mxu0 %v446
        %519 = vmatprep.subr.bf16.mxu0 0
        %520 = vmatpush1.bf16.msra.mxu0 %v447
        %521 = vmatprep.subr.bf16.mxu0 0
        %522 = vmatpush1.bf16.msra.mxu0 %v448
        %523 = vmatprep.subr.bf16.mxu0 0
        %524 = vmatpush1.bf16.msra.mxu0 %v449
        %525 = vmatprep.subr.bf16.mxu0 0
        %526 = vmatpush1.bf16.msra.mxu0 %v450
        %527 = vmatprep.subr.bf16.mxu0 0
        %528 = vmatpush1.bf16.msra.mxu0 %v451
        %529 = vmatprep.subr.bf16.mxu0 0
        %530 = vmatpush1.bf16.msra.mxu0 %v452
        %531 = vmatprep.subr.bf16.mxu0 0
        %532 = vmatpush1.bf16.msra.mxu0 %v453
        %533 = vmatprep.subr.bf16.mxu0 0
        %534 = vmatpush1.bf16.msra.mxu0 %v454
        %535 = vmatprep.mubr.bf16.mxu0 %v304
        %536 = vmatmul.mubr.bf16.gmra.mrb[0].mxu0 %v297
        %v537 = vpop.f32.mrb[0].mxu0
        %v538 = vadd.f32 0.0, %v537
        %v539 = vpop.f32.mrb[0].mxu0
        %v540 = vpop.f32.mrb[0].mxu0
        %v541 = vpop.f32.mrb[0].mxu0
        %542 = vdwg.mxu0
        %543 = vmatprep.subr.bf16.mxu0 0
        %544 = vmatpush1.bf16.msra.mxu0 %v455
        %545 = vmatprep.subr.bf16.mxu0 0
        %546 = vmatpush1.bf16.msra.mxu0 %v456
        %547 = vmatprep.subr.bf16.mxu0 0
        %548 = vmatpush1.bf16.msra.mxu0 %v457
        %549 = vmatprep.subr.bf16.mxu0 0
        %550 = vmatpush1.bf16.msra.mxu0 %v458
        %551 = vmatprep.subr.bf16.mxu0 0
        %552 = vmatpush1.bf16.msra.mxu0 %v459
        %553 = vmatprep.subr.bf16.mxu0 0
        %554 = vmatpush1.bf16.msra.mxu0 %v460
        %555 = vmatprep.subr.bf16.mxu0 0
        %556 = vmatpush1.bf16.msra.mxu0 %v461
        %557 = vmatprep.subr.bf16.mxu0 0
        %558 = vmatpush1.bf16.msra.mxu0 %v462
        %559 = vmatprep.subr.bf16.mxu0 0
        %560 = vmatpush1.bf16.msra.mxu0 %v463
        %561 = vmatprep.subr.bf16.mxu0 0
        %562 = vmatpush1.bf16.msra.mxu0 %v464
        %563 = vmatprep.subr.bf16.mxu0 0
        %564 = vmatpush1.bf16.msra.mxu0 %v465
        %565 = vmatprep.subr.bf16.mxu0 0
        %566 = vmatpush1.bf16.msra.mxu0 %v466
        %567 = vmatprep.subr.bf16.mxu0 0
        %568 = vmatpush1.bf16.msra.mxu0 %v467
        %569 = vmatprep.subr.bf16.mxu0 0
        %570 = vmatpush1.bf16.msra.mxu0 %v468
        %571 = vmatprep.subr.bf16.mxu0 0
        %572 = vmatpush1.bf16.msra.mxu0 %v469
        %573 = vmatprep.subr.bf16.mxu0 0
        %574 = vmatpush1.bf16.msra.mxu0 %v470
        %575 = vmatprep.mubr.bf16.mxu0 %v306
        %576 = vmatmul.mubr.bf16.gmra.mrb[0].mxu0 %v305
        %v577 = vpop.f32.mrb[0].mxu0
        %v578 = vadd.f32 %v538, %v577
        %v579 = vpop.f32.mrb[0].mxu0
        %v580 = vpop.f32.mrb[0].mxu0
        %v581 = vpop.f32.mrb[0].mxu0
        %582 = vdwg.mxu0
        %v583 = vadd.f32 %v216, %v578
        %584 = vst [vmem:[#allocation7] sm:$0x3] %v583
        // Predicated region
        $region41: #{tpu_custom_call.1} parent=27 // pred_check
          %p585 = pneg %p104
        $region42: #{tpu_custom_call.1} parent=27 // pred_check_branch
          %587 = sbr.rel (%p585) target = $region44
        $region43: #{tpu_custom_call.1} parent=27 // pred_region
          %s589 = ssub.s32 32, 32
          %590 = vsyncadd [#allocation4], %s589
          %s591 = smul.addr %s24, 32
          %s592 = scalar_lea.hbm %s2, %s591
          %s594 = sshll.u32 [#allocation7], 4
          %s595 = int_to_ptr.vmem [resolvable:$true] %s594
          %597 = dma.vmem_to_hbm [thread:$0]  %s595, 32, %s592, [#allocation4]
        $region44: #{tpu_custom_call.1} parent=27 // pred_fallthru
          _
        // Predicated region
        $region45: #{tpu_custom_call.1} parent=27 // pred_check
          %p598 = pneg %p104
        $region46: #{tpu_custom_call.1} parent=27 // pred_check_branch
          %600 = sbr.rel (%p598) target = $region48
        $region47: #{tpu_custom_call.1} parent=27 // pred_region
          %601 = dma.done [#allocation4], 32
        $region48: #{tpu_custom_call.1} parent=27 // pred_fallthru
          _
      $region28: #{tpu_custom_call.1} parent=5 // pred_fallthru
        _
      %p602 = scmp.le.s32.totalorder 2, %s15
      // Predicated region
      $region49: #{tpu_custom_call.1} parent=5 // pred_check
        %p603 = pneg %p602
      $region50: #{tpu_custom_call.1} parent=5 // pred_check_branch
        %605 = sbr.rel (%p603) target = $region52
      $region51: #{tpu_custom_call.1} parent=5 // pred_region
        %s606 = ssub.s32 %s15, 2
      $region52: #{tpu_custom_call.1} parent=5 // pred_fallthru
        _
    $region6: #{tpu_custom_call.1} parent=1 // loop_footer
      %s19 = sadd.s32 1, %s15
    $region7: #{tpu_custom_call.1} parent=1 // loop_footer_branch
      %14 = sbr.rel target = $region3
    $region8: #{tpu_custom_call.1} parent=1 // loop_exit
      _
    %607 = vsyncpa [#allocation3], 1
    %s608 = scalar_lea.sflag [#allocation3], 1
    %609 = vsyncpa %s608, 1
    %610 = vsyncpa [#allocation6], 1
    %s611 = scalar_lea.sflag [#allocation6], 1
    %612 = vsyncpa %s611, 1
    %613 = vsyncpa [#allocation4], 1
    %s614 = scalar_lea.sflag [#allocation4], 1
    %615 = vsyncpa %s614, 1

</llo_original>
